<compile_context>
chip_gen: v7x
topology: tpu7x:2x2x1
jax: 0.10.0
libtpu: 0.0.40
codegen_flags: <defaults>
</compile_context>

<pallas_src>
import jax
import jax.numpy as jnp
from jax.experimental import pallas as pl
from jax.experimental.pallas import tpu as pltpu


# ---------------------------------------------------------------------------
# Kernel: per-(n,c)-row affine modulation   o = x * scale + shift
# scale already has the "+1" pre-applied in the wrapper; math in f32.
# ---------------------------------------------------------------------------
def _modulate_kernel(scale_ref, shift_ref, x_ref, o_ref):
    x = x_ref[...].astype(jnp.float32)          # (Rblk, Sblk)
    scale = scale_ref[...].astype(jnp.float32)  # (Rblk, 1) -> lane broadcast
    shift = shift_ref[...].astype(jnp.float32)  # (Rblk, 1)
    o_ref[...] = (x * scale + shift).astype(o_ref.dtype)


def _largest_divisor_at_most(n, cap):
    """Largest d with d | n and d <= cap (n >= 1, cap >= 1)."""
    cap = min(cap, n)
    best = 1
    i = 1
    while i * i <= n:
        if n % i == 0:
            if i <= cap and i > best:
                best = i
            j = n // i
            if j <= cap and j > best:
                best = j
        i += 1
    return best


def _choose_tiles(rows, cols, itemsize, tile_bytes):
    """Byte-targeted (Rblk, Sblk).

    Favors wide, lane-dense tiles (long contiguous DMA chunks, unmasked vst):
    first size the lane dim assuming an 8-row tile, then grow the row dim
    until the tile reaches ~tile_bytes.  Row tiles are multiples of 8 sublanes
    (or the full dim); lane tiles are multiples of 128 lanes (or the full dim).
    """
    r0 = min(rows, 8)

    # Lane (spatial) tile.
    s_target = max(128, tile_bytes // (r0 * itemsize))
    if s_target >= cols:
        sblk = cols                                   # full extent (always legal)
    else:
        sblk = max(128, (s_target // 128) * 128)      # multiple of 128 lanes

    # Row tile.
    r_target = max(r0, tile_bytes // (sblk * itemsize))
    if rows <= r_target:
        rblk = rows                                   # full extent
    else:
        cap8 = max(1, r_target // 8)
        if rows % 8 == 0:
            d = _largest_divisor_at_most(rows // 8, cap8)
            # Prefer an exact divisor (no skinny masked last row tile) unless
            # it would shrink the tile pathologically (>2x below target).
            rblk = 8 * d if 2 * d >= cap8 else 8 * cap8
        else:
            rblk = 8 * cap8                           # partial last tile is OK
    return rblk, sblk


def apply_style(x, latent, w, b, *, w_mul, b_mul,
                tile_bytes=4 * 1024 * 1024, vmem_limit_bytes=None,
                alias_x=True):
    """ApplyStyle forward.

    x: [N, C, *spatial]; latent: [N, L]; w: [2C, L]; b: [2C].
    Returns x * (style[:, 0] + 1) + style[:, 1] with
      style = leaky_relu(latent @ (w * w_mul)^T + b * b_mul, 0.2).

    tile_bytes: per-buffer byte target for the x / out tiles.  Default 4 MiB
      (review: >=4 MiB on v7x, where 3.2 TB/s HBM makes the ~0.35 us/step
      overhead significant; also near-roofline on v6e).  A vmem limit is
      passed automatically when the double-buffered tiles would exceed v5e's
      16 MiB scoped-VMEM default.  Keep <= ~6 MiB/buffer on v7x (64 MiB
      physical VMEM).
    alias_x: declare out-aliases-x so XLA can reuse x's HBM buffer when the
      caller donates x (no second full-size feature map); if x stays live,
      XLA inserts a protective copy, so correctness is never affected.
    """
    N, C = x.shape[0], x.shape[1]
    S = 1
    for d in x.shape[2:]:
        S *= d
    rows = N * C
    itemsize = jnp.dtype(x.dtype).itemsize

    # --- Tiny FC + LeakyReLU + scale/shift split, computed once (option (a)).
    # A [N, L] x [L, 2C] matmul is a few KB of work; hoisting it removes the
    # per-grid-step C-fold-redundant recompute from the kernel entirely.
    lat32 = latent.astype(jnp.float32)
    w32 = w.astype(jnp.float32) * w_mul
    b32 = b.astype(jnp.float32) * b_mul
    style = lat32 @ w32.T + b32.reshape(1, -1)                 # (N, 2C)
    style = jnp.where(style >= 0.0, style, 0.2 * style)        # LeakyReLU(0.2)
    scale_rows = (style[:, :C] + 1.0).reshape(rows, 1)         # +1 pre-applied
    shift_rows = style[:, C:].reshape(rows, 1)

    # --- Lane-dense 2-D view of x (metadata-only reshape).
    x2 = x.reshape(rows, S)

    rblk, sblk = _choose_tiles(rows, S, itemsize, tile_bytes)
    grid = (pl.cdiv(rows, rblk), pl.cdiv(S, sblk))

    # --- VMEM budget: x-in and out double-buffered + tiny scale/shift buffers.
    big = rblk * sblk * itemsize
    need = 4 * big + 16 * rblk + (1 << 20)
    if vmem_limit_bytes is None and need > 12 * 1024 * 1024:
        vmem_limit_bytes = need + (8 << 20)

    cp_kwargs = dict(dimension_semantics=("parallel", "parallel"))
    if vmem_limit_bytes is not None:
        cp_kwargs["vmem_limit_bytes"] = int(vmem_limit_bytes)

    call_kwargs = {}
    if alias_x:
        call_kwargs["input_output_aliases"] = {2: 0}   # x2 is input index 2

    out2 = pl.pallas_call(
        _modulate_kernel,
        out_shape=jax.ShapeDtypeStruct((rows, S), x.dtype),
        grid=grid,
        in_specs=[
            pl.BlockSpec((rblk, 1), lambda ri, si: (ri, 0)),      # scale (+1)
            pl.BlockSpec((rblk, 1), lambda ri, si: (ri, 0)),      # shift
            pl.BlockSpec((rblk, sblk), lambda ri, si: (ri, si)),  # x tile
        ],
        out_specs=pl.BlockSpec((rblk, sblk), lambda ri, si: (ri, si)),
        compiler_params=pltpu.CompilerParams(**cp_kwargs),
        cost_estimate=pl.CostEstimate(
            flops=2 * rows * S,
            transcendentals=0,
            bytes_accessed=2 * rows * S * itemsize + 8 * rows,
        ),
        **call_kwargs,
    )(scale_rows, shift_rows, x2)

    return out2.reshape(x.shape)


def apply_style_reference(x, latent, w, b, *, w_mul, b_mul):
    """Pure-JAX reference matching the PyTorch forward."""
    s = latent @ (w * w_mul).T + b * b_mul
    s = jnp.where(s >= 0.0, s, 0.2 * s)                         # FC's LeakyReLU(0.2)
    N, C = x.shape[0], x.shape[1]
    s = s.reshape((N, 2, C) + (1,) * (x.ndim - 2))
    return x * (s[:, 0] + 1.0) + s[:, 1]


if __name__ == "__main__":
    def fc_params(key, C, L):
        # FC init (gain=1.0, use_wscale=True, lrmul=1.0).
        gain, lrmul = 1.0, 1.0
        he_std = gain * L ** (-0.5)
        init_std = 1.0 / lrmul
        w_mul = he_std * lrmul
        b_mul = lrmul
        w = jax.random.normal(key, (2 * C, L), dtype=jnp.float32) * init_std
        b = jnp.zeros((2 * C,), dtype=jnp.float32)
        return w, b, w_mul, b_mul

    def run_case(key, shape, L, dtype=jnp.float32, tile_bytes=4 << 20, tol=1e-5):
        N, C = shape[0], shape[1]
        kx, kl, kw = jax.random.split(key, 3)
        x = jax.random.normal(kx, shape, dtype=jnp.float32).astype(dtype)
        latent = jax.random.normal(kl, (N, L), dtype=jnp.float32)
        w, b, w_mul, b_mul = fc_params(kw, C, L)

        out = apply_style(x, latent, w, b, w_mul=w_mul, b_mul=b_mul,
                          tile_bytes=tile_bytes)
        out = jax.block_until_ready(out)
        ref = apply_style_reference(x, latent, w, b, w_mul=w_mul, b_mul=b_mul)

        assert out.shape == x.shape and out.dtype == x.dtype
        ok = jnp.allclose(out.astype(jnp.float32), ref.astype(jnp.float32),
                          atol=tol, rtol=tol)
        assert ok, f"mismatch vs reference for shape={shape} dtype={dtype}"

    key = jax.random.PRNGKey(0)
    k1, k2, k3, k4 = jax.random.split(key, 4)

    # ApplyStyle(dlatent_size=32, num_feature=4) on a 2x4x8^3 feature map.
    run_case(k1, (2, 4, 8, 8, 8), L=32)
    # Ragged spatial (S=64, not a multiple of 128): full-extent lane fallback.
    run_case(k2, (4, 4, 4, 4, 4), L=32)
    # Tiny tile_bytes forces a (2, 2) grid: exercises row & spatial tiling.
    run_case(k3, (2, 8, 4, 16, 16), L=32, tile_bytes=16 * 1024)
    # bf16 x/out (halves HBM traffic); in-kernel math stays f32.
    run_case(k4, (2, 4, 8, 8, 8), L=32, dtype=jnp.bfloat16, tol=2e-2)

    print("KERNEL_OK")
</pallas_src>

<mosaic_0001>
module attributes {stable_mosaic.version = 11 : i64} {
  func.func @_modulate_kernel(%arg0: i32, %arg1: i32, %arg2: memref<8x1xf32, #tpu.memory_space<vmem>>, %arg3: memref<8x1xf32, #tpu.memory_space<vmem>>, %arg4: memref<8x512xf32, #tpu.memory_space<vmem>>, %arg5: memref<8x512xf32, #tpu.memory_space<vmem>>) attributes {dimension_semantics = [#tpu.dimension_semantics<parallel>, #tpu.dimension_semantics<parallel>], iteration_bounds = array<i64: 1, 1>, scalar_prefetch = 0 : i64, scratch_operands = 0 : i64, tpu.core_type = #tpu.core_type<tc>, window_params = [{transform_indices = @transform_0, window_bounds = array<i64: 8, 1>}, {transform_indices = @transform_1, window_bounds = array<i64: 8, 1>}, {transform_indices = @transform_2, window_bounds = array<i64: 8, 512>}, {transform_indices = @transform_3, window_bounds = array<i64: 8, 512>}]} {
    %c0 = arith.constant 0 : index
    %c0_0 = arith.constant 0 : index
    %0 = vector.load %arg4[%c0, %c0_0] : memref<8x512xf32, #tpu.memory_space<vmem>>, vector<8x512xf32>
    %c0_1 = arith.constant 0 : index
    %c0_2 = arith.constant 0 : index
    %1 = vector.load %arg2[%c0_1, %c0_2] : memref<8x1xf32, #tpu.memory_space<vmem>>, vector<8x1xf32>
    %c0_3 = arith.constant 0 : index
    %c0_4 = arith.constant 0 : index
    %2 = vector.load %arg3[%c0_3, %c0_4] : memref<8x1xf32, #tpu.memory_space<vmem>>, vector<8x1xf32>
    %3 = vector.broadcast %1 : vector<8x1xf32> to vector<8x512xf32>
    %4 = arith.mulf %0, %3 : vector<8x512xf32>
    %5 = vector.broadcast %2 : vector<8x1xf32> to vector<8x512xf32>
    %6 = arith.addf %4, %5 : vector<8x512xf32>
    %c0_5 = arith.constant 0 : index
    %c0_6 = arith.constant 0 : index
    %7 = vector.load %arg5[%c0_5, %c0_6] : memref<8x512xf32, #tpu.memory_space<vmem>>, vector<8x512xf32>
    tpu.vector_store %arg5[%c0_5, %c0_6], %6 {strides = array<i32>} : memref<8x512xf32, #tpu.memory_space<vmem>>, vector<8x512xf32>,
    return
  }
  func.func @transform_0(%arg0: i32, %arg1: i32) -> (i32, i32) {
    %c0_i32 = arith.constant 0 : i32
    %c0_i32_0 = arith.constant 0 : i32
    return %arg0, %c0_i32 : i32, i32
  }
  func.func @transform_1(%arg0: i32, %arg1: i32) -> (i32, i32) {
    %c0_i32 = arith.constant 0 : i32
    %c0_i32_0 = arith.constant 0 : i32
    return %arg0, %c0_i32 : i32, i32
  }
  func.func @transform_2(%arg0: i32, %arg1: i32) -> (i32, i32) {
    %c0_i32 = arith.constant 0 : i32
    return %arg0, %arg1 : i32, i32
  }
  func.func @transform_3(%arg0: i32, %arg1: i32) -> (i32, i32) {
    %c0_i32 = arith.constant 0 : i32
    return %arg0, %arg1 : i32, i32
  }
}

</mosaic_0001>

<llo_original>
// kernel: tpu_custom_call.1
$region0: #{tpu_custom_call.1}
  #allocation0 [shape = 'u32[]', space=smem, size = 0x4, offset = 0x4, fixed_abs, tag = 'smem constant byte address 0x4 - core index']
  #allocation1 [shape = 'u32[144,128]{1,0:T(1,128)}', space=vmem, size = 0x12000, scoped, tag = 'internal scratch']
  %s0 = inlined_call_operand.vmem [shape: f32[8,1], index: 0, kind: input, shape index: {}]
  %s1 = inlined_call_operand.vmem [shape: f32[8,1], index: 1, kind: input, shape index: {}]
  %s2 = inlined_call_operand.hbm [shape: f32[8,512], index: 2, kind: input, shape index: {}, may-alias: {2,3}]
  %s3 = inlined_call_operand.hbm [shape: f32[8,512], index: 3, kind: output, shape index: {}, may-alias: {2,3}]
  %s4 = sld [smem:[#allocation0]]
  $region26: #{tpu_custom_call.1} parent=0
    _
  %s6 = ssub.s32 1, %s4
  %s7 = scalar_select 0, %s6, %s4
  $region1: #{tpu_custom_call.1} parent=0
    #allocation2 [shape = 'u8[16384]{0}', space=vmem, size = 0x4000, scoped, tag = 'input window, operand 2, single buffered']
    #allocation3 [shape = 's32[1]{0}', space=sflag, size = 0x4, scoped, tag = 'scoped memory for tpu_custom_call.1']
    #allocation4 [shape = 's32[1]{0}', space=sflag, size = 0x4, scoped, tag = 'scoped memory for tpu_custom_call.1']
    #allocation5 [shape = 'u8[16384]{0}', space=vmem, size = 0x4000, scoped, tag = 'output window, operand 0, single buffered']
    %8 = vsyncpa [#allocation3], 0
    %9 = vsyncpa [#allocation4], 0
    // Predicated region
    $region2: #{tpu_custom_call.1} parent=1 // pred_check
      _
    $region3: #{tpu_custom_call.1} parent=1 // pred_check_branch
      %11 = sbr.rel (0) target = $region5
    $region4: #{tpu_custom_call.1} parent=1 // pred_region
      _
    $region5: #{tpu_custom_call.1} parent=1 // pred_fallthru
      _
    // Predicated region
    $region6: #{tpu_custom_call.1} parent=1 // pred_check
      _
    $region7: #{tpu_custom_call.1} parent=1 // pred_check_branch
      %13 = sbr.rel (0) target = $region9
    $region8: #{tpu_custom_call.1} parent=1 // pred_region
      _
    $region9: #{tpu_custom_call.1} parent=1 // pred_fallthru
      _
    // Predicated region
    $region10: #{tpu_custom_call.1} parent=1 // pred_check
      _
    $region11: #{tpu_custom_call.1} parent=1 // pred_check_branch
      %15 = sbr.rel (0) target = $region13
    $region12: #{tpu_custom_call.1} parent=1 // pred_region
      %s17 = ssub.s32 512, 512
      %18 = vsyncadd [#allocation3], %s17
      %s20 = sshll.u32 [#allocation2], 4
      %s21 = int_to_ptr.vmem [resolvable:$true] %s20
      %23 = dma.hbm_to_vmem [thread:$0]  %s2, 512, %s21, [#allocation3]
    $region13: #{tpu_custom_call.1} parent=1 // pred_fallthru
      _
    // Predicated region
    $region14: #{tpu_custom_call.1} parent=1 // pred_check
      _
    $region15: #{tpu_custom_call.1} parent=1 // pred_check_branch
      %25 = sbr.rel (0) target = $region17
    $region16: #{tpu_custom_call.1} parent=1 // pred_region
      %26 = dma.done [#allocation3], 512
    $region17: #{tpu_custom_call.1} parent=1 // pred_fallthru
      _
    %v27 = vld [vmem:[#allocation2] sm:$0xff]
    %v28 = vld [vmem:[#allocation2 + $0x8] sm:$0xff]
    %v29 = vld [vmem:[#allocation2 + $0x10] sm:$0xff]
    %v30 = vld [vmem:[#allocation2 + $0x18] sm:$0xff]
    %v31 = vld [vmem:[%s0] sm:$0xff]
    %v32 = vld [vmem:[%s1] sm:$0xff]
    %34 = vset.pattern.permute.xlu0 0
    %35 = vperm.xlu0 %34, %v31
    %v36 = vpop.permute.xlu0 %35
    %v38 = vmul.f32 %v27, %v36
    %v39 = vmul.f32 %v28, %v36
    %v40 = vmul.f32 %v29, %v36
    %v41 = vmul.f32 %v30, %v36
    %43 = vset.pattern.permute.xlu0 0
    %44 = vperm.xlu0 %43, %v32
    %v45 = vpop.permute.xlu0 %44
    %v47 = vadd.f32 %v38, %v45
    %v48 = vadd.f32 %v39, %v45
    %v49 = vadd.f32 %v40, %v45
    %v50 = vadd.f32 %v41, %v45
    %51 = vst [vmem:[#allocation5] sm:$0xff] %v47
    %52 = vst [vmem:[#allocation5 + $0x8] sm:$0xff] %v48
    %53 = vst [vmem:[#allocation5 + $0x10] sm:$0xff] %v49
    %54 = vst [vmem:[#allocation5 + $0x18] sm:$0xff] %v50
    // Predicated region
    $region18: #{tpu_custom_call.1} parent=1 // pred_check
      _
    $region19: #{tpu_custom_call.1} parent=1 // pred_check_branch
      %56 = sbr.rel (0) target = $region21
    $region20: #{tpu_custom_call.1} parent=1 // pred_region
      %s58 = ssub.s32 512, 512
      %59 = vsyncadd [#allocation4], %s58
      %s61 = sshll.u32 [#allocation5], 4
      %s62 = int_to_ptr.vmem [resolvable:$true] %s61
      %64 = dma.vmem_to_hbm [thread:$0]  %s62, 512, %s3, [#allocation4]
    $region21: #{tpu_custom_call.1} parent=1 // pred_fallthru
      _
    // Predicated region
    $region22: #{tpu_custom_call.1} parent=1 // pred_check
      _
    $region23: #{tpu_custom_call.1} parent=1 // pred_check_branch
      %66 = sbr.rel (0) target = $region25
    $region24: #{tpu_custom_call.1} parent=1 // pred_region
      %67 = dma.done [#allocation4], 512
    $region25: #{tpu_custom_call.1} parent=1 // pred_fallthru
      _
    %68 = vsyncpa [#allocation3], 1
    %69 = vsyncpa [#allocation4], 1

</llo_original>
